<compile_context>
chip_gen: v7x
topology: tpu7x:2x2x1
jax: 0.10.0
libtpu: 0.0.40
codegen_flags: <defaults>
</compile_context>

<pallas_src>
import jax
import jax.numpy as jnp
from jax import lax
from jax.experimental import pallas as pl
from jax.experimental.pallas import tpu as pltpu


def _make_kernel(tm, tk, ori_resident, mxu_bf16):
    def kernel(margin_ref, lab_col_ref, lab_row_ref, ori_sq_ref,
               adv_ref, ori_ref, dist_ref,
               cross_acc, adv_sq_acc, cong_acc):
        k = pl.program_id(1)
        nk = pl.num_programs(1)

        @pl.when(k == 0)
        def _():
            cross_acc[...] = jnp.zeros_like(cross_acc)
            adv_sq_acc[...] = jnp.zeros_like(adv_sq_acc)
            cong_acc[...] = jnp.zeros_like(cong_acc)

        adv_blk = adv_ref[...]                                     # (tm, tk)
        row0 = pl.multiple_of(pl.program_id(0) * tm, tm)
        if ori_resident:
            # ori_ref is the full (B, D) matrix, VMEM-resident (one HBM pass).
            col0 = pl.multiple_of(k * tk, tk)
            ori_blk = ori_ref[:, pl.ds(col0, tk)]                  # (B, tk)
            ori_cong = ori_ref[pl.ds(row0, tm), pl.ds(col0, tk)]   # (tm, tk)
        else:
            # ori_ref is the k-th (B, tk) column tile.
            ori_blk = ori_ref[...]                                 # (B, tk)
            ori_cong = ori_ref[pl.ds(row0, tm), :]                 # (tm, tk)

        # MXU: adv_tile @ ori^T with f32 accumulation.
        lhs, rhs = adv_blk, ori_blk
        if mxu_bf16 and lhs.dtype == jnp.float32:
            lhs = lhs.astype(jnp.bfloat16)
            rhs = rhs.astype(jnp.bfloat16)
        cross_acc[...] += lax.dot_general(
            lhs, rhs,
            dimension_numbers=(((1,), (1,)), ((), ())),
            preferred_element_type=jnp.float32)                    # (tm, B)

        adv_f = adv_blk.astype(jnp.float32)
        # ||adv_i||^2 per tile row: lane reduce over data already in vregs.
        adv_sq_acc[...] += jnp.sum(adv_f * adv_f, axis=1, keepdims=True)   # (tm, 1)

        # Congener (same-index adv/ori) distance -- exact (adv - ori)^2 form, using
        # the rows already resident in the ori block (no extra HBM stream).
        diff = adv_f - ori_cong.astype(jnp.float32)
        cong_acc[...] += jnp.sum(diff * diff, axis=1, keepdims=True)       # (tm, 1)

        @pl.when(k == nk - 1)
        def _():
            distmat = adv_sq_acc[...] + ori_sq_ref[...] - 2.0 * cross_acc[...]  # (tm, B)
            same = lab_col_ref[...] == lab_row_ref[...]                          # (tm, B)
            nearest = jnp.min(jnp.where(same, jnp.inf, distmat),
                              axis=1, keepdims=True)                             # (tm, 1)
            congener = jnp.clip(cong_acc[...], 1e-12, 1e12)
            nearest = jnp.clip(nearest, 1e-12, 1e12)
            dist_ref[...] = jnp.maximum(congener - nearest + margin_ref[0], 0.0)

    return kernel


def _pick_tm(b, itemsize):
    # Align to the dtype sublane pack: 8 for f32, 16 for bf16, 32 for int8/fp8.
    pack = max(8, 32 // max(1, itemsize))
    for c in (512, 256, 128, 64, 32, 16, 8):
        if c <= b and b % c == 0 and c % pack == 0:
            return c
    return b


def _pick_tk(d, b, tm, itemsize, budget):
    # Descending candidates; bounded by the per-generation VMEM budget.
    fallback = None
    for c in (2048, 1024, 512, 256, 128):
        if c <= d and d % c == 0:
            fallback = c
            if 2 * (tm * c + b * c) * itemsize <= budget:
                return c
    return fallback if fallback is not None else d


def triplet_loss(x, labels, margin, *, tm=None, tk=None,
                 ori_resident=None, mxu_bf16=False):
    """x: (2*B, D) float, labels: (B,) int, margin: python float. Returns scalar loss."""
    n, d = x.shape
    b = n // 2
    ori = x[:b]
    adv = x[b:2 * b]
    itemsize = jnp.dtype(x.dtype).itemsize

    try:
        vmem_cap = int(pltpu.get_tpu_info().vmem_capacity_bytes)
    except Exception:
        vmem_cap = 64 * 1024 * 1024  # conservative (v7x per-core)
    budget = int(vmem_cap * 0.6)

    if tm is None:
        tm = _pick_tm(b, itemsize)
    if tk is None:
        tk = _pick_tk(d, b, tm, itemsize, budget)
    assert b % tm == 0 and d % tk == 0, (b, tm, d, tk)
    num_m = b // tm
    num_k = d // tk

    # Per-step VMEM estimate (double-buffered streams + f32 cross scratch + slack).
    fixed = tm * b * 4 + 2 * tm * tk * itemsize + (1 << 20)
    resident_cost = fixed + 2 * b * d * itemsize
    tiled_cost = fixed + 2 * b * tk * itemsize
    if ori_resident is None:
        ori_resident = resident_cost <= budget
    est = resident_cost if ori_resident else tiled_cost
    vmem_limit = min(vmem_cap, max(32 * 1024 * 1024, 2 * est))

    lab = labels.astype(jnp.int32)
    lab_col = lab.reshape(b, 1)
    lab_row = lab.reshape(1, b)
    margin_arr = jnp.full((1,), margin, dtype=jnp.float32)
    # m-invariant ||ori_j||^2 computed once, lane-dense (1, B).
    ori_f32 = ori.astype(jnp.float32)
    ori_sq = jnp.sum(ori_f32 * ori_f32, axis=1).reshape(1, b)

    if ori_resident:
        ori_spec = pl.BlockSpec((b, d), lambda m, k: (0, 0))     # constant block -> one HBM pass
    else:
        ori_spec = pl.BlockSpec((b, tk), lambda m, k: (0, k))    # k-tiled fallback (large B*D)

    grid_spec = pltpu.PrefetchScalarGridSpec(
        num_scalar_prefetch=0,
        grid=(num_m, num_k),
        in_specs=[
            pl.BlockSpec(memory_space=pltpu.MemorySpace.SMEM),   # margin scalar
            pl.BlockSpec((tm, 1), lambda m, k: (m, 0)),          # labels column (per row tile)
            pl.BlockSpec((1, b), lambda m, k: (0, 0)),           # labels row (lane dense)
            pl.BlockSpec((1, b), lambda m, k: (0, 0)),           # ||ori||^2 row (lane dense)
            pl.BlockSpec((tm, tk), lambda m, k: (m, k)),         # adv row tile
            ori_spec,                                            # ori (resident or k-tiled)
        ],
        out_specs=pl.BlockSpec((tm, 1), lambda m, k: (m, 0)),
        scratch_shapes=[
            pltpu.VMEM((tm, b), jnp.float32),   # cross accumulator
            pltpu.VMEM((tm, 1), jnp.float32),   # ||adv||^2 accumulator
            pltpu.VMEM((tm, 1), jnp.float32),   # congener accumulator
        ],
    )

    dist = pl.pallas_call(
        _make_kernel(tm, tk, ori_resident, mxu_bf16),
        out_shape=jax.ShapeDtypeStruct((b, 1), jnp.float32),
        grid_spec=grid_spec,
        compiler_params=pltpu.CompilerParams(
            dimension_semantics=("parallel", "arbitrary"),
            vmem_limit_bytes=int(vmem_limit),
        ),
    )(margin_arr, lab_col, lab_row, ori_sq, adv, ori)

    # Final hinge mean is O(B); do it in plain JAX outside the kernel.
    return jnp.mean(dist)


if __name__ == "__main__":
    B, D, NUM_CLASSES = 16, 1024, 10
    key = jax.random.PRNGKey(0)
    kx, kl = jax.random.split(key)
    x = jax.random.normal(kx, (2 * B, D), dtype=jnp.float32)
    labels = jax.random.randint(kl, (B,), 0, NUM_CLASSES, dtype=jnp.int32)
    margin = 0.5

    # pure-JAX reference (same intended semantics as the PyTorch module)
    ori, adv = x[:B], x[B:]
    distmat = (jnp.sum(adv * adv, axis=1)[:, None]
               + jnp.sum(ori * ori, axis=1)[None, :]
               - 2.0 * adv @ ori.T)
    same = labels[:, None] == labels[None, :]
    congener = jnp.clip(jnp.diag(distmat), 1e-12, 1e12)
    nearest = jnp.clip(jnp.min(jnp.where(~same, distmat, jnp.inf), axis=1), 1e-12, 1e12)
    ref = jnp.mean(jnp.maximum(congener - nearest + margin, 0.0))

    # tm=8, tk=512 -> grid (2, 2): exercises both the parallel row axis and the
    # arbitrary feature-reduction axis at small shapes.  Run both ori paths.
    loss_resident = jax.block_until_ready(
        triplet_loss(x, labels, margin, tm=8, tk=512, ori_resident=True))
    loss_tiled = jax.block_until_ready(
        triplet_loss(x, labels, margin, tm=8, tk=512, ori_resident=False))

    assert jnp.allclose(loss_resident, ref, atol=5e-2, rtol=5e-3), (
        float(loss_resident), float(ref))
    assert jnp.allclose(loss_tiled, ref, atol=5e-2, rtol=5e-3), (
        float(loss_tiled), float(ref))
    print("KERNEL_OK")
</pallas_src>

<mosaic_0001>
module attributes {stable_mosaic.version = 11 : i64} {
  func.func @kernel(%arg0: i32, %arg1: i32, %arg2: memref<1xf32, #tpu.memory_space<smem>>, %arg3: memref<8x1xi32, #tpu.memory_space<vmem>>, %arg4: memref<1x16xi32, #tpu.memory_space<vmem>>, %arg5: memref<1x16xf32, #tpu.memory_space<vmem>>, %arg6: memref<8x512xf32, #tpu.memory_space<vmem>>, %arg7: memref<16x1024xf32, #tpu.memory_space<vmem>>, %arg8: memref<8x1xf32, #tpu.memory_space<vmem>>, %arg9: memref<8x16xf32, #tpu.memory_space<vmem>>, %arg10: memref<8x1xf32, #tpu.memory_space<vmem>>, %arg11: memref<8x1xf32, #tpu.memory_space<vmem>>) attributes {dimension_semantics = [#tpu.dimension_semantics<parallel>, #tpu.dimension_semantics<arbitrary>], iteration_bounds = array<i64: 2, 2>, scalar_prefetch = 0 : i64, scratch_operands = 3 : i64, tpu.core_type = #tpu.core_type<tc>, window_params = [{transform_indices = @transform_0, window_bounds = array<i64: 1>}, {transform_indices = @transform_1, window_bounds = array<i64: 8, 1>}, {pipeline_mode = #tpu.pipeline_mode<synchronous>, transform_indices = @transform_2, window_bounds = array<i64: 1, 16>}, {pipeline_mode = #tpu.pipeline_mode<synchronous>, transform_indices = @transform_3, window_bounds = array<i64: 1, 16>}, {transform_indices = @transform_4, window_bounds = array<i64: 8, 512>}, {pipeline_mode = #tpu.pipeline_mode<synchronous>, transform_indices = @transform_5, window_bounds = array<i64: 16, 1024>}, {transform_indices = @transform_6, window_bounds = array<i64: 8, 1>}]} {
    %c0_i32 = arith.constant 0 : i32
    %0 = arith.cmpi eq, %arg1, %c0_i32 : i32
    %1 = arith.extui %0 : i1 to i32
    %c0_i32_0 = arith.constant 0 : i32
    %2 = arith.cmpi ne, %1, %c0_i32_0 : i32
    scf.if %2 {
      %cst_18 = arith.constant 0.000000e+00 : f32
      %33 = vector.broadcast %cst_18 : f32 to vector<8x16xf32>
      %c0_19 = arith.constant 0 : index
      %c0_20 = arith.constant 0 : index
      %34 = vector.load %arg9[%c0_19, %c0_20] : memref<8x16xf32, #tpu.memory_space<vmem>>, vector<8x16xf32>
      tpu.vector_store %arg9[%c0_19, %c0_20], %33 {strides = array<i32>} : memref<8x16xf32, #tpu.memory_space<vmem>>, vector<8x16xf32>,
      %cst_21 = arith.constant 0.000000e+00 : f32
      %35 = vector.broadcast %cst_21 : f32 to vector<8x1xf32>
      %c0_22 = arith.constant 0 : index
      %c0_23 = arith.constant 0 : index
      %36 = vector.load %arg10[%c0_22, %c0_23] : memref<8x1xf32, #tpu.memory_space<vmem>>, vector<8x1xf32>
      tpu.vector_store %arg10[%c0_22, %c0_23], %35 {strides = array<i32>} : memref<8x1xf32, #tpu.memory_space<vmem>>, vector<8x1xf32>,
      %cst_24 = arith.constant 0.000000e+00 : f32
      %37 = vector.broadcast %cst_24 : f32 to vector<8x1xf32>
      %c0_25 = arith.constant 0 : index
      %c0_26 = arith.constant 0 : index
      %38 = vector.load %arg11[%c0_25, %c0_26] : memref<8x1xf32, #tpu.memory_space<vmem>>, vector<8x1xf32>
      tpu.vector_store %arg11[%c0_25, %c0_26], %37 {strides = array<i32>} : memref<8x1xf32, #tpu.memory_space<vmem>>, vector<8x1xf32>,
    } else {
    }
    %c0 = arith.constant 0 : index
    %c0_1 = arith.constant 0 : index
    %3 = vector.load %arg6[%c0, %c0_1] : memref<8x512xf32, #tpu.memory_space<vmem>>, vector<8x512xf32>
    %c8_i32 = arith.constant 8 : i32
    %4 = arith.muli %arg0, %c8_i32 : i32
    %5 = tpu.assume_multiple %4, 8 : i32
    %c512_i32 = arith.constant 512 : i32
    %6 = arith.muli %arg1, %c512_i32 : i32
    %7 = tpu.assume_multiple %6, 512 : i32
    %c0_2 = arith.constant 0 : index
    %8 = arith.index_cast %7 : i32 to index
    %9 = vector.load %arg7[%c0_2, %8] : memref<16x1024xf32, #tpu.memory_space<vmem>>, vector<16x512xf32>
    %10 = arith.index_cast %5 : i32 to index
    %11 = arith.index_cast %7 : i32 to index
    %12 = vector.load %arg7[%10, %11] : memref<16x1024xf32, #tpu.memory_space<vmem>>, vector<8x512xf32>
    %c0_3 = arith.constant 0 : index
    %c0_4 = arith.constant 0 : index
    %13 = vector.load %arg9[%c0_3, %c0_4] : memref<8x16xf32, #tpu.memory_space<vmem>>, vector<8x16xf32>
    %cst = arith.constant dense<0.000000e+00> : vector<8x16xf32>
    %14 = tpu.matmul %3, %9, %cst {dimension_numbers = #tpu.dot_dimension_numbers<[1], [1], [0], [0], [0, 0, 1, 0], [], []>} : vector<8x512xf32>, vector<16x512xf32>, vector<8x16xf32> -> vector<8x16xf32>
    %15 = arith.addf %13, %14 : vector<8x16xf32>
    %c0_5 = arith.constant 0 : index
    %c0_6 = arith.constant 0 : index
    %16 = vector.load %arg9[%c0_5, %c0_6] : memref<8x16xf32, #tpu.memory_space<vmem>>, vector<8x16xf32>
    tpu.vector_store %arg9[%c0_5, %c0_6], %15 {strides = array<i32>} : memref<8x16xf32, #tpu.memory_space<vmem>>, vector<8x16xf32>,
    %c0_7 = arith.constant 0 : index
    %c0_8 = arith.constant 0 : index
    %17 = vector.load %arg10[%c0_7, %c0_8] : memref<8x1xf32, #tpu.memory_space<vmem>>, vector<8x1xf32>
    %18 = arith.mulf %3, %3 : vector<8x512xf32>
    %cst_9 = arith.constant dense<0.000000e+00> : vector<8xf32>
    %19 = vector.multi_reduction <add>, %18, %cst_9 [1] : vector<8x512xf32> to vector<8xf32>
    %20 = vector.shape_cast %19 : vector<8xf32> to vector<8x1xf32>
    %21 = arith.addf %17, %20 : vector<8x1xf32>
    %c0_10 = arith.constant 0 : index
    %c0_11 = arith.constant 0 : index
    %22 = vector.load %arg10[%c0_10, %c0_11] : memref<8x1xf32, #tpu.memory_space<vmem>>, vector<8x1xf32>
    tpu.vector_store %arg10[%c0_10, %c0_11], %21 {strides = array<i32>} : memref<8x1xf32, #tpu.memory_space<vmem>>, vector<8x1xf32>,
    %23 = arith.subf %3, %12 : vector<8x512xf32>
    %c0_12 = arith.constant 0 : index
    %c0_13 = arith.constant 0 : index
    %24 = vector.load %arg11[%c0_12, %c0_13] : memref<8x1xf32, #tpu.memory_space<vmem>>, vector<8x1xf32>
    %25 = arith.mulf %23, %23 : vector<8x512xf32>
    %cst_14 = arith.constant dense<0.000000e+00> : vector<8xf32>
    %26 = vector.multi_reduction <add>, %25, %cst_14 [1] : vector<8x512xf32> to vector<8xf32>
    %27 = vector.shape_cast %26 : vector<8xf32> to vector<8x1xf32>
    %28 = arith.addf %24, %27 : vector<8x1xf32>
    %c0_15 = arith.constant 0 : index
    %c0_16 = arith.constant 0 : index
    %29 = vector.load %arg11[%c0_15, %c0_16] : memref<8x1xf32, #tpu.memory_space<vmem>>, vector<8x1xf32>
    tpu.vector_store %arg11[%c0_15, %c0_16], %28 {strides = array<i32>} : memref<8x1xf32, #tpu.memory_space<vmem>>, vector<8x1xf32>,
    %c1_i32 = arith.constant 1 : i32
    %30 = arith.cmpi eq, %arg1, %c1_i32 : i32
    %31 = arith.extui %30 : i1 to i32
    %c0_i32_17 = arith.constant 0 : i32
    %32 = arith.cmpi ne, %31, %c0_i32_17 : i32
    scf.if %32 {
      %c0_18 = arith.constant 0 : index
      %c0_19 = arith.constant 0 : index
      %33 = vector.load %arg10[%c0_18, %c0_19] : memref<8x1xf32, #tpu.memory_space<vmem>>, vector<8x1xf32>
      %c0_20 = arith.constant 0 : index
      %c0_21 = arith.constant 0 : index
      %34 = vector.load %arg5[%c0_20, %c0_21] : memref<1x16xf32, #tpu.memory_space<vmem>>, vector<1x16xf32>
      %35 = vector.broadcast %33 : vector<8x1xf32> to vector<8x16xf32>
      %36 = vector.broadcast %34 : vector<1x16xf32> to vector<8x16xf32>
      %37 = arith.addf %35, %36 : vector<8x16xf32>
      %c0_22 = arith.constant 0 : index
      %c0_23 = arith.constant 0 : index
      %38 = vector.load %arg9[%c0_22, %c0_23] : memref<8x16xf32, #tpu.memory_space<vmem>>, vector<8x16xf32>
      %cst_24 = arith.constant 2.000000e+00 : f32
      %39 = vector.broadcast %cst_24 : f32 to vector<8x16xf32>
      %40 = arith.mulf %39, %38 : vector<8x16xf32>
      %41 = arith.subf %37, %40 : vector<8x16xf32>
      %c0_25 = arith.constant 0 : index
      %c0_26 = arith.constant 0 : index
      %42 = vector.load %arg3[%c0_25, %c0_26] : memref<8x1xi32, #tpu.memory_space<vmem>>, vector<8x1xi32>
      %c0_27 = arith.constant 0 : index
      %c0_28 = arith.constant 0 : index
      %43 = vector.load %arg4[%c0_27, %c0_28] : memref<1x16xi32, #tpu.memory_space<vmem>>, vector<1x16xi32>
      %44 = vector.broadcast %42 : vector<8x1xi32> to vector<8x16xi32>
      %45 = vector.broadcast %43 : vector<1x16xi32> to vector<8x16xi32>
      %46 = arith.cmpi eq, %44, %45 : vector<8x16xi32>
      %cst_29 = arith.constant 0x7F800000 : f32
      %47 = vector.broadcast %cst_29 : f32 to vector<8x16xf32>
      %48 = arith.select %46, %47, %41 : vector<8x16xi1>, vector<8x16xf32>
      %cst_30 = arith.constant dense<0x7F800000> : vector<8xf32>
      %49 = vector.multi_reduction <minimumf>, %48, %cst_30 [1] : vector<8x16xf32> to vector<8xf32>
      %50 = vector.shape_cast %49 : vector<8xf32> to vector<8x1xf32>
      %c0_31 = arith.constant 0 : index
      %c0_32 = arith.constant 0 : index
      %51 = vector.load %arg11[%c0_31, %c0_32] : memref<8x1xf32, #tpu.memory_space<vmem>>, vector<8x1xf32>
      %cst_33 = arith.constant 9.99999996E-13 : f32
      %cst_34 = arith.constant 9.99999995E+11 : f32
      %52 = vector.broadcast %cst_33 : f32 to vector<8x1xf32>
      %53 = arith.maximumf %52, %51 : vector<8x1xf32>
      %54 = vector.broadcast %cst_34 : f32 to vector<8x1xf32>
      %55 = arith.minimumf %54, %53 : vector<8x1xf32>
      %cst_35 = arith.constant 9.99999996E-13 : f32
      %cst_36 = arith.constant 9.99999995E+11 : f32
      %56 = vector.broadcast %cst_35 : f32 to vector<8x1xf32>
      %57 = arith.maximumf %56, %50 : vector<8x1xf32>
      %58 = vector.broadcast %cst_36 : f32 to vector<8x1xf32>
      %59 = arith.minimumf %58, %57 : vector<8x1xf32>
      %60 = arith.subf %55, %59 : vector<8x1xf32>
      %c0_37 = arith.constant 0 : index
      %61 = memref.load %arg2[%c0_37] : memref<1xf32, #tpu.memory_space<smem>>
      %62 = vector.broadcast %61 : f32 to vector<8x1xf32>
      %63 = arith.addf %60, %62 : vector<8x1xf32>
      %cst_38 = arith.constant 0.000000e+00 : f32
      %64 = vector.broadcast %cst_38 : f32 to vector<8x1xf32>
      %65 = arith.maximumf %63, %64 : vector<8x1xf32>
      %c0_39 = arith.constant 0 : index
      %c0_40 = arith.constant 0 : index
      %66 = vector.load %arg8[%c0_39, %c0_40] : memref<8x1xf32, #tpu.memory_space<vmem>>, vector<8x1xf32>
      tpu.vector_store %arg8[%c0_39, %c0_40], %65 {strides = array<i32>} : memref<8x1xf32, #tpu.memory_space<vmem>>, vector<8x1xf32>,
    } else {
    }
    return
  }
  func.func @transform_0(%arg0: i32, %arg1: i32) -> i32 {
    %c0_i32 = arith.constant 0 : i32
    %c0_i32_0 = arith.constant 0 : i32
    return %c0_i32 : i32
  }
  func.func @transform_1(%arg0: i32, %arg1: i32) -> (i32, i32) {
    %c0_i32 = arith.constant 0 : i32
    %c0_i32_0 = arith.constant 0 : i32
    return %arg0, %c0_i32 : i32, i32
  }
  func.func @transform_2(%arg0: i32, %arg1: i32) -> (i32, i32) {
    %c0_i32 = arith.constant 0 : i32
    %c0_i32_0 = arith.constant 0 : i32
    %c0_i32_1 = arith.constant 0 : i32
    return %c0_i32, %c0_i32_0 : i32, i32
  }
  func.func @transform_3(%arg0: i32, %arg1: i32) -> (i32, i32) {
    %c0_i32 = arith.constant 0 : i32
    %c0_i32_0 = arith.constant 0 : i32
    %c0_i32_1 = arith.constant 0 : i32
    return %c0_i32, %c0_i32_0 : i32, i32
  }
  func.func @transform_4(%arg0: i32, %arg1: i32) -> (i32, i32) {
    %c0_i32 = arith.constant 0 : i32
    return %arg0, %arg1 : i32, i32
  }
  func.func @transform_5(%arg0: i32, %arg1: i32) -> (i32, i32) {
    %c0_i32 = arith.constant 0 : i32
    %c0_i32_0 = arith.constant 0 : i32
    %c0_i32_1 = arith.constant 0 : i32
    return %c0_i32, %c0_i32_0 : i32, i32
  }
  func.func @transform_6(%arg0: i32, %arg1: i32) -> (i32, i32) {
    %c0_i32 = arith.constant 0 : i32
    %c0_i32_0 = arith.constant 0 : i32
    return %arg0, %c0_i32 : i32, i32
  }
}

</mosaic_0001>

<llo_original>
// kernel: tpu_custom_call.1
$region0: #{tpu_custom_call.1}
  #allocation0 [shape = 'u32[]', space=smem, size = 0x4, offset = 0x4, fixed_abs, tag = 'smem constant byte address 0x4 - core index']
  #allocation1 [shape = 'u32[144,128]{1,0:T(1,128)}', space=vmem, size = 0x12000, scoped, tag = 'internal scratch']
  #allocation2 [shape = 'f32[8,16]{1,0:T(8,128)}', space=vmem, size = 0x1000, scoped, tag = 'scratch operand']
  #allocation3 [shape = 'f32[8,1]{1,0:T(8,128)}', space=vmem, size = 0x1000, scoped, tag = 'scratch operand']
  #allocation4 [shape = 'f32[8,1]{1,0:T(8,128)}', space=vmem, size = 0x1000, scoped, tag = 'scratch operand']
  #allocation5 [shape = 'f32[1]{0:T(128)S(6)}', space=smem, size = 0x200, scoped, tag = 'scoped memory for tpu_custom_call.1']
  %s0 = inlined_call_operand.<no memory space> [shape: f32[1], index: 0, kind: input, shape index: {}]
  %s1 = inlined_call_operand.vmem [shape: s32[16,1], index: 1, kind: input, shape index: {}]
  %s2 = inlined_call_operand.vmem [shape: s32[1,16], index: 2, kind: input, shape index: {}]
  %s3 = inlined_call_operand.vmem [shape: f32[1,16], index: 3, kind: input, shape index: {}]
  %s4 = inlined_call_operand.hbm [shape: f32[16,1024], index: 4, kind: input, shape index: {}]
  %s5 = inlined_call_operand.hbm [shape: f32[16,1024], index: 5, kind: input, shape index: {}]
  %s6 = inlined_call_operand.vmem [shape: f32[16,1], index: 6, kind: output, shape index: {}]
  %s7 = sld [smem:[#allocation0]]
  $region73: #{tpu_custom_call.1} parent=0
    _
  %s9 = ssub.s32 1, %s7
  %s10 = scalar_select 0, %s9, %s7
  %11 = sst [smem:[#allocation5]] %s0
  $region1: #{tpu_custom_call.1} parent=0
    #allocation6 [shape = 'u8[32768]{0}', space=vmem, size = 0x8000, scoped, tag = 'input window, operand 4']
    #allocation7 [shape = 's32[2]{0}', space=sflag, size = 0x8, scoped, tag = 'scoped memory for tpu_custom_call.1']
    #allocation8 [shape = 'u8[65536]{0}', space=vmem, size = 0x10000, scoped, tag = 'input window, operand 5, single buffered']
    #allocation9 [shape = 's32[1]{0}', space=sflag, size = 0x4, scoped, tag = 'scoped memory for tpu_custom_call.1']
    %12 = vsyncpa [#allocation7], 0
    %s13 = scalar_lea.sflag [#allocation7], 1
    %14 = vsyncpa %s13, 0
    %15 = vsyncpa [#allocation9], 0
    loop: start=0, step=1, limit=6
    $region2: #{tpu_custom_call.1} parent=1 // loop_pre_header
      _
    $region3: #{tpu_custom_call.1} parent=1 // loop_header
      %s17 = sphi 0, %s21
      %p18 = scmp.ge.s32.totalorder %s17, 6
      %s24 = sphi 0, %s36
      %s25 = sphi 0, %s32
      %s26 = sphi 0, %s24
      %s27 = sphi 0, %s25
      %s28 = sphi 0, %s26
      %s29 = sphi 0, %s27
      %s37 = sphi 0, %s37
      %s39 = sphi 0, %s37
      %s40 = sphi 0, %s39
      %s54 = sphi 0, %s40
      %s60 = sphi 0, %s62
      %s63 = sphi 0, %s60
      %s64 = sphi 0, %s63
      %s80 = sphi 0, %s64
      %s84 = sphi 0, %s84
      %s86 = sphi 0, %s84
      %s87 = sphi 0, %s86
      %s101 = sphi 0, %s87
      %s105 = sphi 0, %s105
      %s107 = sphi 0, %s105
      %s108 = sphi 0, %s107
      %s122 = sphi 0, %s108
      %s130 = sphi 0, %s132
      %s133 = sphi 0, %s130
      %s134 = sphi 0, %s133
      %s150 = sphi 0, %s134
      %s154 = sphi 0, %s154
      %s156 = sphi 0, %s154
      %s157 = sphi 0, %s156
      %s171 = sphi 0, %s157
      %s177 = sphi 0, %s179
      %s180 = sphi 0, %s177
      %s181 = sphi 0, %s180
      %s197 = sphi 0, %s181
    $region4: #{tpu_custom_call.1} parent=1 // loop_header_branch
      %20 = sbr.rel (%p18) target = $region8
    $region5: #{tpu_custom_call.1} parent=1 // loop_body
      %s22 = ssub.s32 %s17, 1
      %s23 = ssub.s32 %s17, 2
      %s30 = sadd.s32 1, %s25
      %p31 = scmp.ge.s32.totalorder %s30, 2
      %s32 = scalar_select %p31, 0, %s30
      %s33 = sadd.s32 1, %s24
      %s34 = scalar_select %p31, %s33, %s24
      %p35 = scmp.ge.s32.totalorder %s34, 2
      %s36 = scalar_select %p35, 0, %s34
      %s38 = sadd.s32 %s37, 1
      %p41 = scmp.eq.s32.totalorder %s17, 3
      %p42 = scmp.ne.s32.totalorder %s37, %s39
      %p43 = scmp.eq.s32.totalorder %s17, 0
      %p44 = por %p42, %p43
      %p45 = scmp.ne.s32.totalorder %s37, %s39
      %p46 = scmp.eq.s32.totalorder %s22, 3
      %p47 = por %p45, %p46
      %p48 = scmp.ne.s32.totalorder %s39, %s40
      %p49 = scmp.eq.s32.totalorder %s22, 0
      %p50 = por %p48, %p49
      %p51 = scmp.ne.s32.totalorder %s39, %s40
      %p52 = scmp.eq.s32.totalorder %s23, 3
      %p53 = por %p51, %p52
      %p55 = scmp.ne.s32.totalorder %s40, %s54
      %p56 = scmp.eq.s32.totalorder %s23, 0
      %p57 = por %p55, %p56
      %s58 = ssub.s32 %s24, %s36
      %p59 = scmp.eq.s32.totalorder %s58, 0
      %s61 = sadd.s32 %s60, 1
      %s62 = scalar_select %p59, %s60, %s61
      %p65 = pneg %p59
      %p66 = scmp.eq.s32.totalorder %s17, 3
      %p67 = por %p65, %p66
      %p68 = scmp.ne.s32.totalorder %s60, %s63
      %p69 = scmp.eq.s32.totalorder %s17, 0
      %p70 = por %p68, %p69
      %p71 = scmp.ne.s32.totalorder %s60, %s63
      %p72 = scmp.eq.s32.totalorder %s22, 3
      %p73 = por %p71, %p72
      %p74 = scmp.ne.s32.totalorder %s63, %s64
      %p75 = scmp.eq.s32.totalorder %s22, 0
      %p76 = por %p74, %p75
      %p77 = scmp.ne.s32.totalorder %s63, %s64
      %p78 = scmp.eq.s32.totalorder %s23, 3
      %p79 = por %p77, %p78
      %p81 = scmp.ne.s32.totalorder %s64, %s80
      %p82 = scmp.eq.s32.totalorder %s23, 0
      %p83 = por %p81, %p82
      %s85 = sadd.s32 %s84, 1
      %p88 = scmp.eq.s32.totalorder %s17, 3
      %p89 = scmp.ne.s32.totalorder %s84, %s86
      %p90 = scmp.eq.s32.totalorder %s17, 0
      %p91 = por %p89, %p90
      %p92 = scmp.ne.s32.totalorder %s84, %s86
      %p93 = scmp.eq.s32.totalorder %s22, 3
      %p94 = por %p92, %p93
      %p95 = scmp.ne.s32.totalorder %s86, %s87
      %p96 = scmp.eq.s32.totalorder %s22, 0
      %p97 = por %p95, %p96
      %p98 = scmp.ne.s32.totalorder %s86, %s87
      %p99 = scmp.eq.s32.totalorder %s23, 3
      %p100 = por %p98, %p99
      %p102 = scmp.ne.s32.totalorder %s87, %s101
      %p103 = scmp.eq.s32.totalorder %s23, 0
      %p104 = por %p102, %p103
      %s106 = sadd.s32 %s105, 1
      %p109 = scmp.eq.s32.totalorder %s17, 3
      %p110 = scmp.ne.s32.totalorder %s105, %s107
      %p111 = scmp.eq.s32.totalorder %s17, 0
      %p112 = por %p110, %p111
      %p113 = scmp.ne.s32.totalorder %s105, %s107
      %p114 = scmp.eq.s32.totalorder %s22, 3
      %p115 = por %p113, %p114
      %p116 = scmp.ne.s32.totalorder %s107, %s108
      %p117 = scmp.eq.s32.totalorder %s22, 0
      %p118 = por %p116, %p117
      %p119 = scmp.ne.s32.totalorder %s107, %s108
      %p120 = scmp.eq.s32.totalorder %s23, 3
      %p121 = por %p119, %p120
      %p123 = scmp.ne.s32.totalorder %s108, %s122
      %p124 = scmp.eq.s32.totalorder %s23, 0
      %p125 = por %p123, %p124
      %s126 = ssub.s32 %s24, %s36
      %s127 = ssub.s32 %s25, %s32
      %s128 = sor.u32 %s126, %s127
      %p129 = scmp.eq.s32.totalorder %s128, 0
      %s131 = sadd.s32 %s130, 1
      %s132 = scalar_select %p129, %s130, %s131
      %p135 = pneg %p129
      %p136 = scmp.eq.s32.totalorder %s17, 3
      %p137 = por %p135, %p136
      %p138 = scmp.ne.s32.totalorder %s130, %s133
      %p139 = scmp.eq.s32.totalorder %s17, 0
      %p140 = por %p138, %p139
      %p141 = scmp.ne.s32.totalorder %s130, %s133
      %p142 = scmp.eq.s32.totalorder %s22, 3
      %p143 = por %p141, %p142
      %p144 = scmp.ne.s32.totalorder %s133, %s134
      %p145 = scmp.eq.s32.totalorder %s22, 0
      %p146 = por %p144, %p145
      %p147 = scmp.ne.s32.totalorder %s133, %s134
      %p148 = scmp.eq.s32.totalorder %s23, 3
      %p149 = por %p147, %p148
      %p151 = scmp.ne.s32.totalorder %s134, %s150
      %p152 = scmp.eq.s32.totalorder %s23, 0
      %p153 = por %p151, %p152
      %s155 = sadd.s32 %s154, 1
      %p158 = scmp.eq.s32.totalorder %s17, 3
      %p159 = scmp.ne.s32.totalorder %s154, %s156
      %p160 = scmp.eq.s32.totalorder %s17, 0
      %p161 = por %p159, %p160
      %p162 = scmp.ne.s32.totalorder %s154, %s156
      %p163 = scmp.eq.s32.totalorder %s22, 3
      %p164 = por %p162, %p163
      %p165 = scmp.ne.s32.totalorder %s156, %s157
      %p166 = scmp.eq.s32.totalorder %s22, 0
      %p167 = por %p165, %p166
      %p168 = scmp.ne.s32.totalorder %s156, %s157
      %p169 = scmp.eq.s32.totalorder %s23, 3
      %p170 = por %p168, %p169
      %p172 = scmp.ne.s32.totalorder %s157, %s171
      %p173 = scmp.eq.s32.totalorder %s23, 0
      %p174 = por %p172, %p173
      %s175 = ssub.s32 %s24, %s36
      %p176 = scmp.eq.s32.totalorder %s175, 0
      %s178 = sadd.s32 %s177, 1
      %s179 = scalar_select %p176, %s177, %s178
      %p182 = pneg %p176
      %p183 = scmp.eq.s32.totalorder %s17, 3
      %p184 = por %p182, %p183
      %p185 = scmp.ne.s32.totalorder %s177, %s180
      %p186 = scmp.eq.s32.totalorder %s17, 0
      %p187 = por %p185, %p186
      %p188 = scmp.ne.s32.totalorder %s177, %s180
      %p189 = scmp.eq.s32.totalorder %s22, 3
      %p190 = por %p188, %p189
      %p191 = scmp.ne.s32.totalorder %s180, %s181
      %p192 = scmp.eq.s32.totalorder %s22, 0
      %p193 = por %p191, %p192
      %p194 = scmp.ne.s32.totalorder %s180, %s181
      %p195 = scmp.eq.s32.totalorder %s23, 3
      %p196 = por %p194, %p195
      %p198 = scmp.ne.s32.totalorder %s181, %s197
      %p199 = scmp.eq.s32.totalorder %s23, 0
      %p200 = por %p198, %p199
      %p201 = scmp.le.s32.totalorder 1, %s17
      %p202 = scmp.lt.s32.totalorder %s17, 5
      %p203 = pnand %p201, %p202
      %p204 = pneg %p203
      // Predicated region
      $region9: #{tpu_custom_call.1} parent=5 // pred_check
        _
      $region10: #{tpu_custom_call.1} parent=5 // pred_check_branch
        %206 = sbr.rel (%p203) target = $region12
      $region11: #{tpu_custom_call.1} parent=5 // pred_region
        %s207 = ssub.s32 %s17, 1
        // Predicated region
        $region13: #{tpu_custom_call.1} parent=11 // pred_check
          %p208 = pneg %p50
        $region14: #{tpu_custom_call.1} parent=11 // pred_check_branch
          %210 = sbr.rel (%p208) target = $region16
        $region15: #{tpu_custom_call.1} parent=11 // pred_region
          _
        $region16: #{tpu_custom_call.1} parent=11 // pred_fallthru
          _
        // Predicated region
        $region17: #{tpu_custom_call.1} parent=11 // pred_check
          %p211 = pneg %p97
        $region18: #{tpu_custom_call.1} parent=11 // pred_check_branch
          %213 = sbr.rel (%p211) target = $region20
        $region19: #{tpu_custom_call.1} parent=11 // pred_region
          _
        $region20: #{tpu_custom_call.1} parent=11 // pred_fallthru
          _
        // Predicated region
        $region21: #{tpu_custom_call.1} parent=11 // pred_check
          %p214 = pneg %p118
        $region22: #{tpu_custom_call.1} parent=11 // pred_check_branch
          %216 = sbr.rel (%p214) target = $region24
        $region23: #{tpu_custom_call.1} parent=11 // pred_region
          _
        $region24: #{tpu_custom_call.1} parent=11 // pred_fallthru
          _
        // Predicated region
        $region25: #{tpu_custom_call.1} parent=11 // pred_check
          %p217 = pneg %p167
        $region26: #{tpu_custom_call.1} parent=11 // pred_check_branch
          %219 = sbr.rel (%p217) target = $region28
        $region27: #{tpu_custom_call.1} parent=11 // pred_region
          %s221 = ssub.s32 2048, 2048
          %222 = vsyncadd [#allocation9], %s221
          %s223 = sshll.u32 [#allocation8], 4
          %s224 = int_to_ptr.vmem [resolvable:$true] %s223
          %229 = dma.hbm_to_vmem [thread:$0]  %s5, 2048, %s224, [#allocation9], 1024, 1024, 64
        $region28: #{tpu_custom_call.1} parent=11 // pred_fallthru
          _
      $region12: #{tpu_custom_call.1} parent=5 // pred_fallthru
        _
      %p230 = scmp.lt.s32.totalorder %s17, 4
      // Predicated region
      $region29: #{tpu_custom_call.1} parent=5 // pred_check
        %p231 = pneg %p230
      $region30: #{tpu_custom_call.1} parent=5 // pred_check_branch
        %233 = sbr.rel (%p231) target = $region32
      $region31: #{tpu_custom_call.1} parent=5 // pred_region
        // Predicated region
        $region33: #{tpu_custom_call.1} parent=31 // pred_check
          %p234 = pneg %p70
        $region34: #{tpu_custom_call.1} parent=31 // pred_check_branch
          %236 = sbr.rel (%p234) target = $region36
        $region35: #{tpu_custom_call.1} parent=31 // pred_region
          %p237 = scmp.lt.s32.totalorder %s24, 1
          %s238 = scalar_select %p237, %s24, 1
          %s239 = smul.addr %s238, 8
          %s240 = scalar_lea.vmem %s1, %s239
        $region36: #{tpu_custom_call.1} parent=31 // pred_fallthru
          _
        // Predicated region
        $region37: #{tpu_custom_call.1} parent=31 // pred_check
          %p241 = pneg %p140
        $region38: #{tpu_custom_call.1} parent=31 // pred_check_branch
          %243 = sbr.rel (%p241) target = $region40
        $region39: #{tpu_custom_call.1} parent=31 // pred_region
          %s244 = sand.u32 %s130, 1
          %s245 = scalar_lea.sflag [#allocation7], %s244
          %s246 = sand.u32 %s130, 1
          %s247 = smul.addr %s246, 32
          %s248 = scalar_lea.vmem [#allocation6], %s247
          %s249 = smul.u32 4, %s25
          %s251 = ssub.s32 512, 512
          %252 = vsyncadd %s245, %s251
          %s253 = smul.addr %s24, 8
          %s254 = sadd.s32 %s249, %s253
          %s255 = smul.addr %s254, 128
          %s256 = scalar_lea.hbm %s4, %s255
          %s258 = sshll.u32 %s248, 4
          %s259 = int_to_ptr.vmem [resolvable:$true] %s258
          %261 = dma.hbm_to_vmem [thread:$0]  %s256, 512, %s259, %s245
        $region40: #{tpu_custom_call.1} parent=31 // pred_fallthru
          _
      $region32: #{tpu_custom_call.1} parent=5 // pred_fallthru
        _
      %p262 = scmp.le.s32.totalorder 1, %s17
      %p263 = scmp.lt.s32.totalorder %s17, 5
      %p264 = pnand %p262, %p263
      %p265 = pneg %p264
      // Predicated region
      $region41: #{tpu_custom_call.1} parent=5 // pred_check
        _
      $region42: #{tpu_custom_call.1} parent=5 // pred_check_branch
        %267 = sbr.rel (%p264) target = $region44
      $region43: #{tpu_custom_call.1} parent=5 // pred_region
        %s268 = ssub.s32 %s17, 1
        %s269 = sand.u32 %s133, 1
        %s270 = scalar_lea.sflag [#allocation7], %s269
        %s271 = sand.u32 %s133, 1
        %s272 = smul.addr %s271, 32
        %s273 = scalar_lea.vmem [#allocation6], %s272
        // Predicated region
        $region45: #{tpu_custom_call.1} parent=43 // pred_check
          %p274 = pneg %p146
        $region46: #{tpu_custom_call.1} parent=43 // pred_check_branch
          %276 = sbr.rel (%p274) target = $region48
        $region47: #{tpu_custom_call.1} parent=43 // pred_region
          %277 = dma.done %s270, 512
        $region48: #{tpu_custom_call.1} parent=43 // pred_fallthru
          _
        // Predicated region
        $region49: #{tpu_custom_call.1} parent=43 // pred_check
          %p278 = pneg %p167
        $region50: #{tpu_custom_call.1} parent=43 // pred_check_branch
          %280 = sbr.rel (%p278) target = $region52
        $region51: #{tpu_custom_call.1} parent=43 // pred_region
          %281 = dma.done [#allocation9], 2048
        $region52: #{tpu_custom_call.1} parent=43 // pred_fallthru
          _
        %p282 = pneg %p50
        %p283 = pneg %p47
        %p284 = scmp.lt.s32.totalorder %s26, 1
        %s285 = scalar_select %p284, %s26, 1
        %s286 = smul.addr %s285, 8
        %s287 = scalar_lea.vmem %s1, %s286
        %p288 = pneg %p76
        %p289 = pneg %p73
        %p290 = pneg %p97
        %p291 = pneg %p94
        %p292 = pneg %p118
        %p293 = pneg %p115
        %s294 = sand.u32 %s133, 1
        %s295 = scalar_lea.sflag [#allocation7], %s294
        %s296 = sand.u32 %s133, 1
        %s297 = smul.addr %s296, 32
        %s298 = scalar_lea.vmem [#allocation6], %s297
        %p299 = pneg %p146
        %p300 = pneg %p143
        %p301 = pneg %p167
        %p302 = pneg %p164
        %p303 = pneg %p193
        %p304 = pneg %p190
        %p305 = scmp.lt.s32.totalorder %s26, 1
        %s306 = scalar_select %p305, %s26, 1
        %s307 = smul.addr %s306, 8
        %s308 = scalar_lea.vmem %s6, %s307
        %p309 = scmp.lt.s32.totalorder %s26, 1
        %s310 = scalar_select %p309, %s26, 1
        %s311 = smul.addr %s310, 8
        %s312 = scalar_lea.vmem %s1, %s311
        %s313 = smul.u32 4, %s27
        %p314 = scmp.lt.s32.totalorder %s26, 1
        %s315 = scalar_select %p314, %s26, 1
        %s316 = smul.addr %s315, 8
        %s317 = scalar_lea.vmem %s6, %s316
        %p318 = scmp.eq.s32.totalorder %s27, 0
        // Predicated region
        $region53: #{tpu_custom_call.1} parent=43 // pred_check
          %p319 = pneg %p318
        $region54: #{tpu_custom_call.1} parent=43 // pred_check_branch
          %321 = sbr.rel (%p319) target = $region56
        $region55: #{tpu_custom_call.1} parent=43 // pred_region
          %vm322 = vcmask 130048
          %323 = vst.msk [vmem:[#allocation2] sm:$0xff] %vm322, 0.0
          %vm324 = vcmask 7168
          %325 = vst.msk [vmem:[#allocation3] sm:$0xff] %vm324, 0.0
          %326 = vst.msk [vmem:[#allocation4] sm:$0xff] %vm324, 0.0
        $region56: #{tpu_custom_call.1} parent=43 // pred_fallthru
          _
        %v327 = vld [vmem:[%s273] sm:$0xff]
        %v328 = vld [vmem:[%s273 + $0x8] sm:$0xff]
        %v329 = vld [vmem:[%s273 + $0x10] sm:$0xff]
        %v330 = vld [vmem:[%s273 + $0x18] sm:$0xff]
        %s331 = smul.u32 %s26, 8
        %s332 = smul.u32 %s27, 512
        %s333 = sshra.s32 %s332, 7
        %s334 = sand.u32 %s332, 127
        %s335 = smul.addr %s333, 8
        %s336 = scalar_lea.vmem [#allocation8], %s335
        %v337 = vld [vmem:[%s336] sm:$0xff]
        %v338 = vld [vmem:[%s336 + $0x8] sm:$0xff]
        %v339 = vld [vmem:[%s336 + $0x10] sm:$0xff]
        %v340 = vld [vmem:[%s336 + $0x18] sm:$0xff]
        %v341 = vld [vmem:[%s336 + $0x40] sm:$0xff]
        %v342 = vld [vmem:[%s336 + $0x48] sm:$0xff]
        %v343 = vld [vmem:[%s336 + $0x50] sm:$0xff]
        %v344 = vld [vmem:[%s336 + $0x58] sm:$0xff]
        %s345 = sshra.s32 %s331, 3
        %s346 = sand.u32 %s331, 7
        %s347 = smul.u32 %s345, 8
        %s348 = sadd.s32 %s333, %s347
        %s349 = smul.addr %s348, 8
        %s350 = scalar_lea.vmem [#allocation8], %s349
        %v351 = vld [vmem:[%s350] sm:$0xff]
        %v352 = vld [vmem:[%s350 + $0x8] sm:$0xff]
        %v353 = vld [vmem:[%s350 + $0x10] sm:$0xff]
        %v354 = vld [vmem:[%s350 + $0x18] sm:$0xff]
        %v355 = vld [vmem:[#allocation2] sm:$0xff]
        %356 = vmatprep.subr.mxu0 %v338
        %357 = vmatpush1.xpose.msra.mxu0 %v337
        %358 = vmatprep.subr.mxu0 %v342
        %359 = vmatpush1.xpose.msra.mxu0 %v341
        %360 = vmatprep.subr.mxu0 0.0
        %361 = vmatpush1.xpose.msra.mxu0 0.0
        %362 = vmatprep.subr.mxu0 0.0
        %363 = vmatpush1.xpose.msra.mxu0 0.0
        %364 = vmatprep.subr.mxu0 0.0
        %365 = vmatpush1.xpose.msra.mxu0 0.0
        %366 = vmatprep.subr.mxu0 0.0
        %367 = vmatpush1.xpose.msra.mxu0 0.0
        %368 = vmatprep.subr.mxu0 0.0
        %369 = vmatpush1.xpose.msra.mxu0 0.0
        %370 = vmatprep.subr.mxu0 0.0
        %371 = vmatpush1.xpose.msra.mxu0 0.0
        %372 = vmatprep.subr.mxu0 0.0
        %373 = vmatpush1.xpose.msra.mxu0 0.0
        %374 = vmatprep.subr.mxu0 0.0
        %375 = vmatpush1.xpose.msra.mxu0 0.0
        %376 = vmatprep.subr.mxu0 0.0
        %377 = vmatpush1.xpose.msra.mxu0 0.0
        %378 = vmatprep.subr.mxu0 0.0
        %379 = vmatpush1.xpose.msra.mxu0 0.0
        %380 = vmatprep.subr.mxu0 0.0
        %381 = vmatpush1.xpose.msra.mxu0 0.0
        %382 = vmatprep.subr.mxu0 0.0
        %383 = vmatpush1.xpose.msra.mxu0 0.0
        %384 = vmatprep.subr.mxu0 0.0
        %385 = vmatpush1.xpose.msra.mxu0 0.0
        %386 = vmatprep.subr.mxu0 0.0
        %387 = vmatpush1.xpose.msra.mxu0 0.0
        %388 = vmatprep.subr.mxu0 0.0
        %389 = vmatpush1.xpose.msra.mxu0 0.0
        %390 = vmatprep.subr.mxu0 0.0
        %391 = vmatpush1.xpose.msra.mxu0 0.0
        %392 = vmatprep.subr.mxu0 0.0
        %393 = vmatpush1.xpose.msra.mxu0 0.0
        %394 = vmatprep.subr.mxu0 0.0
        %395 = vmatpush1.xpose.msra.mxu0 0.0
        %396 = vmatprep.subr.mxu0 0.0
        %397 = vmatpush1.xpose.msra.mxu0 0.0
        %398 = vmatprep.subr.mxu0 0.0
        %399 = vmatpush1.xpose.msra.mxu0 0.0
        %400 = vmatprep.subr.mxu0 0.0
        %401 = vmatpush1.xpose.msra.mxu0 0.0
        %402 = vmatprep.subr.mxu0 0.0
        %403 = vmatpush1.xpose.msra.mxu0 0.0
        %404 = vmatprep.subr.mxu0 0.0
        %405 = vmatpush1.xpose.msra.mxu0 0.0
        %406 = vmatprep.subr.mxu0 0.0
        %407 = vmatpush1.xpose.msra.mxu0 0.0
        %408 = vmatprep.subr.mxu0 0.0
        %409 = vmatpush1.xpose.msra.mxu0 0.0
        %410 = vmatprep.subr.mxu0 0.0
        %411 = vmatpush1.xpose.msra.mxu0 0.0
        %412 = vmatprep.subr.mxu0 0.0
        %413 = vmatpush1.xpose.msra.mxu0 0.0
        %414 = vmatprep.subr.mxu0 0.0
        %415 = vmatpush1.xpose.msra.mxu0 0.0
        %416 = vmatprep.subr.mxu0 0.0
        %417 = vmatpush1.xpose.msra.mxu0 0.0
        %418 = vmatprep.subr.mxu0 0.0
        %419 = vmatpush1.xpose.msra.mxu0 0.0
        %420 = vmatprep.mubr.f32.mxu0 %v328
        %421 = vmatmul.mubr.f32.gmra.mrb[0].mxu0 %v327
        %v422 = vpop.f32.mrb[0].mxu0
        %v423 = vadd.f32 0.0, %v422
        %v424 = vpop.f32.mrb[0].mxu0
        %425 = vdwg.mxu0
        %426 = vmatprep.subr.mxu0 %v340
        %427 = vmatpush1.xpose.msra.mxu0 %v339
        %428 = vmatprep.subr.mxu0 %v344
        %429 = vmatpush1.xpose.msra.mxu0 %v343
        %430 = vmatprep.subr.mxu0 0.0
        %431 = vmatpush1.xpose.msra.mxu0 0.0
        %432 = vmatprep.subr.mxu0 0.0
        %433 = vmatpush1.xpose.msra.mxu0 0.0
        %434 = vmatprep.subr.mxu0 0.0
        %435 = vmatpush1.xpose.msra.mxu0 0.0
        %436 = vmatprep.subr.mxu0 0.0
        %437 = vmatpush1.xpose.msra.mxu0 0.0
        %438 = vmatprep.subr.mxu0 0.0
        %439 = vmatpush1.xpose.msra.mxu0 0.0
        %440 = vmatprep.subr.mxu0 0.0
        %441 = vmatpush1.xpose.msra.mxu0 0.0
        %442 = vmatprep.subr.mxu0 0.0
        %443 = vmatpush1.xpose.msra.mxu0 0.0
        %444 = vmatprep.subr.mxu0 0.0
        %445 = vmatpush1.xpose.msra.mxu0 0.0
        %446 = vmatprep.subr.mxu0 0.0
        %447 = vmatpush1.xpose.msra.mxu0 0.0
        %448 = vmatprep.subr.mxu0 0.0
        %449 = vmatpush1.xpose.msra.mxu0 0.0
        %450 = vmatprep.subr.mxu0 0.0
        %451 = vmatpush1.xpose.msra.mxu0 0.0
        %452 = vmatprep.subr.mxu0 0.0
        %453 = vmatpush1.xpose.msra.mxu0 0.0
        %454 = vmatprep.subr.mxu0 0.0
        %455 = vmatpush1.xpose.msra.mxu0 0.0
        %456 = vmatprep.subr.mxu0 0.0
        %457 = vmatpush1.xpose.msra.mxu0 0.0
        %458 = vmatprep.subr.mxu0 0.0
        %459 = vmatpush1.xpose.msra.mxu0 0.0
        %460 = vmatprep.subr.mxu0 0.0
        %461 = vmatpush1.xpose.msra.mxu0 0.0
        %462 = vmatprep.subr.mxu0 0.0
        %463 = vmatpush1.xpose.msra.mxu0 0.0
        %464 = vmatprep.subr.mxu0 0.0
        %465 = vmatpush1.xpose.msra.mxu0 0.0
        %466 = vmatprep.subr.mxu0 0.0
        %467 = vmatpush1.xpose.msra.mxu0 0.0
        %468 = vmatprep.subr.mxu0 0.0
        %469 = vmatpush1.xpose.msra.mxu0 0.0
        %470 = vmatprep.subr.mxu0 0.0
        %471 = vmatpush1.xpose.msra.mxu0 0.0
        %472 = vmatprep.subr.mxu0 0.0
        %473 = vmatpush1.xpose.msra.mxu0 0.0
        %474 = vmatprep.subr.mxu0 0.0
        %475 = vmatpush1.xpose.msra.mxu0 0.0
        %476 = vmatprep.subr.mxu0 0.0
        %477 = vmatpush1.xpose.msra.mxu0 0.0
        %478 = vmatprep.subr.mxu0 0.0
        %479 = vmatpush1.xpose.msra.mxu0 0.0
        %480 = vmatprep.subr.mxu0 0.0
        %481 = vmatpush1.xpose.msra.mxu0 0.0
        %482 = vmatprep.subr.mxu0 0.0
        %483 = vmatpush1.xpose.msra.mxu0 0.0
        %484 = vmatprep.subr.mxu0 0.0
        %485 = vmatpush1.xpose.msra.mxu0 0.0
        %486 = vmatprep.subr.mxu0 0.0
        %487 = vmatpush1.xpose.msra.mxu0 0.0
        %488 = vmatprep.subr.mxu0 0.0
        %489 = vmatpush1.xpose.msra.mxu0 0.0
        %490 = vmatprep.mubr.f32.mxu0 %v330
        %491 = vmatmul.mubr.f32.gmra.mrb[0].mxu0 %v329
        %v492 = vpop.f32.mrb[0].mxu0
        %v493 = vadd.f32 %v423, %v492
        %v494 = vpop.f32.mrb[0].mxu0
        %495 = vdwg.mxu0
        %v496 = vadd.f32 %v355, %v493
        %vm497 = vcmask 130048
        %498 = vst.msk [vmem:[#allocation2] sm:$0xff] %vm497, %v496
        %v499 = vld [vmem:[#allocation3] sm:$0xff]
        %v500 = vmul.f32 %v327, %v327
        %v501 = vmul.f32 %v328, %v328
        %v502 = vmul.f32 %v329, %v329
        %v503 = vmul.f32 %v330, %v330
        %v504 = vadd.f32 %v500, %v501
        %v505 = vadd.f32 %v504, %v502
        %v506 = vadd.f32 %v505, %v503
        %507 = vadd.xlane.f32.xlu0 %v506
        %v508 = vpop.xlane.xlu0 %507
        %v509 = vadd.f32 %v499, %v508
        %vm510 = vcmask 7168
        %511 = vst.msk [vmem:[#allocation3] sm:$0xff] %vm510, %v509
        %v512 = vsub.f32 %v327, %v351
        %v513 = vsub.f32 %v328, %v352
        %v514 = vsub.f32 %v329, %v353
        %v515 = vsub.f32 %v330, %v354
        %v516 = vld [vmem:[#allocation4] sm:$0xff]
        %v517 = vmul.f32 %v512, %v512
        %v518 = vmul.f32 %v513, %v513
        %v519 = vmul.f32 %v514, %v514
        %v520 = vmul.f32 %v515, %v515
        %v521 = vadd.f32 %v517, %v518
        %v522 = vadd.f32 %v521, %v519
        %v523 = vadd.f32 %v522, %v520
        %524 = vadd.xlane.f32.xlu0 %v523
        %v525 = vpop.xlane.xlu0 %524
        %v526 = vadd.f32 %v516, %v525
        %527 = vst.msk [vmem:[#allocation4] sm:$0xff] %vm510, %v526
        %p528 = scmp.eq.s32.totalorder %s27, 1
        // Predicated region
        $region57: #{tpu_custom_call.1} parent=43 // pred_check
          %p529 = pneg %p528
        $region58: #{tpu_custom_call.1} parent=43 // pred_check_branch
          %531 = sbr.rel (%p529) target = $region60
        $region59: #{tpu_custom_call.1} parent=43 // pred_region
          %v532 = vld [vmem:[#allocation3] sm:$0xff]
          %v533 = vld [vmem:[%s3] sm:$0x1]
          %535 = vset.pattern.permute.xlu0 0
          %536 = vperm.xlu0 %535, %v532
          %v537 = vpop.permute.xlu0 %536
          %v540 = vlaneseq
          %v541 = vshrl.u32 %v540, 7
          %v542 = vsub.s32 0, %v541
          %v543 = vrot.slane %v533, %v542
          %v545 = vadd.f32 %v537, %v543
          %v546 = vld [vmem:[#allocation2] sm:$0xff]
          %v547 = vmul.f32 %v546, 2.0
          %v548 = vsub.f32 %v545, %v547
          %v549 = vld [vmem:[%s312] sm:$0xff]
          %v550 = vld [vmem:[%s2] sm:$0x1]
          %551 = vset.pattern.permute.xlu0 0
          %552 = vperm.xlu0 %551, %v549
          %v553 = vpop.permute.xlu0 %552
          %v554 = vlaneseq
          %v555 = vshrl.u32 %v554, 7
          %v556 = vsub.s32 0, %v555
          %v557 = vrot.slane %v550, %v556
          %vm558 = vcmp.eq.s32.totalorder %v553, %v557
          %v559 = vsel %vm558, inf, %v548
          %v560 = vsel %vm497, %v559, inf
          %561 = vmin.xlane.f32.xlu0 %v560
          %v562 = vpop.xlane.xlu0 %561
          %v563 = vld [vmem:[#allocation4] sm:$0xff]
          %v564 = vmax.f32 %v563, 1e-12
          %v565 = vmin.f32 %v564, 1e+12
          %v566 = vmax.f32 %v562, 1e-12
          %v567 = vmin.f32 %v566, 1e+12
          %v568 = vsub.f32 %v565, %v567
          %s569 = sld [smem:[#allocation5]]
          %v570 = vstv %s569
          %v571 = vadd.f32 %v568, %v570
          %v572 = vmax.f32 %v571, 0.0
          %573 = vst.msk [vmem:[%s317] sm:$0xff] %vm510, %v572
        $region60: #{tpu_custom_call.1} parent=43 // pred_fallthru
          _
        %p574 = scmp.lt.s32.totalorder %s26, 1
        %s575 = scalar_select %p574, %s26, 1
        %s576 = smul.addr %s575, 8
        %s577 = scalar_lea.vmem %s6, %s576
        // Predicated region
        $region61: #{tpu_custom_call.1} parent=43 // pred_check
          %p578 = pneg %p190
        $region62: #{tpu_custom_call.1} parent=43 // pred_check_branch
          %580 = sbr.rel (%p578) target = $region64
        $region63: #{tpu_custom_call.1} parent=43 // pred_region
          _
        $region64: #{tpu_custom_call.1} parent=43 // pred_fallthru
          _
      $region44: #{tpu_custom_call.1} parent=5 // pred_fallthru
        _
      %p581 = scmp.le.s32.totalorder 2, %s17
      // Predicated region
      $region65: #{tpu_custom_call.1} parent=5 // pred_check
        %p582 = pneg %p581
      $region66: #{tpu_custom_call.1} parent=5 // pred_check_branch
        %584 = sbr.rel (%p582) target = $region68
      $region67: #{tpu_custom_call.1} parent=5 // pred_region
        %s585 = ssub.s32 %s17, 2
        // Predicated region
        $region69: #{tpu_custom_call.1} parent=67 // pred_check
          %p586 = pneg %p196
        $region70: #{tpu_custom_call.1} parent=67 // pred_check_branch
          %588 = sbr.rel (%p586) target = $region72
        $region71: #{tpu_custom_call.1} parent=67 // pred_region
          %p589 = scmp.lt.s32.totalorder %s28, 1
          %s590 = scalar_select %p589, %s28, 1
          %s591 = smul.addr %s590, 8
          %s592 = scalar_lea.vmem %s6, %s591
        $region72: #{tpu_custom_call.1} parent=67 // pred_fallthru
          _
      $region68: #{tpu_custom_call.1} parent=5 // pred_fallthru
        _
    $region6: #{tpu_custom_call.1} parent=1 // loop_footer
      %s21 = sadd.s32 1, %s17
    $region7: #{tpu_custom_call.1} parent=1 // loop_footer_branch
      %16 = sbr.rel target = $region3
    $region8: #{tpu_custom_call.1} parent=1 // loop_exit
      _
    %593 = vsyncpa [#allocation7], 1
    %s594 = scalar_lea.sflag [#allocation7], 1
    %595 = vsyncpa %s594, 1
    %596 = vsyncpa [#allocation9], 1

</llo_original>
